<compile_context>
chip_gen: v7x
topology: tpu7x:2x2x1
jax: 0.10.0
libtpu: 0.0.40
codegen_flags: <defaults>
</compile_context>

<pallas_src>
import functools

import jax
import jax.numpy as jnp
from jax.experimental import pallas as pl
from jax.experimental.pallas import tpu as pltpu


def _round_up(x, m):
    return ((x + m - 1) // m) * m


# --------------------------------------------------------------------------- #
# Kernel
# --------------------------------------------------------------------------- #
def _ensemble_fused_kernel(x_ref, w1_ref, b1_ref, w2_ref, b2_ref, o_ref, acc_ref):
    """One (batch-tile, K-chunk) step of the fused ensemble forward.

    x_ref:  (Bt, D_in)     input tile (caller dtype; cast to bf16 for the MXU)
    w1_ref: (D_in, tk)     bf16 chunk of member-concatenated first-layer weights
    b1_ref: (1, tk)        f32 chunk of concatenated first-layer biases
    w2_ref: (tk, D_pad)    bf16 chunk of member-stacked second-layer weights (x 1/E)
    b2_ref: (1, D_pad)     f32 sum of member second-layer biases (x 1/E)
    o_ref:  (Bt, D_pad)    output tile (mean over members), lane-padded
    acc_ref:(Bt, D_pad)    f32 accumulator scratch across the K-chunk axis
    """
    k = pl.program_id(1)

    @pl.when(k == 0)
    def _init():
        acc_ref[...] = jnp.zeros_like(acc_ref)

    # Layer 1 for this chunk of the (member, hidden) concatenated feature axis.
    h = jnp.dot(x_ref[...].astype(jnp.bfloat16), w1_ref[...],
                preferred_element_type=jnp.float32)
    h = jnp.maximum(h + b1_ref[...], 0.0)

    # Layer 2 partial product: the K-reduction over (member, hidden) sums the
    # ensemble members; ReLU is column-wise so chunked accumulation is exact.
    acc_ref[...] += jnp.dot(h.astype(jnp.bfloat16), w2_ref[...],
                            preferred_element_type=jnp.float32)

    @pl.when(k == pl.num_programs(1) - 1)
    def _finalize():
        # 1/E already folded into w2/b2 at prep time -> just bias-add + cast.
        o_ref[...] = (acc_ref[...] + b2_ref[...]).astype(o_ref.dtype)


# --------------------------------------------------------------------------- #
# One-time weight preparation (do at model-load time, cache the result)
# --------------------------------------------------------------------------- #
def prepare_ensemble_params(w1, b1, w2, b2, *, max_k_chunk=512):
    """Transpose/reshape/pad/bf16-cast ensemble weights for the fused kernel.

    w1: (E, D_in, H)  b1: (E, H)  w2: (E, H, D_out)  b2: (E, D_out)
    """
    E, D_in, H = w1.shape
    D_out = w2.shape[-1]
    EH = E * H
    inv_e = 1.0 / E

    w1_cat = jnp.transpose(w1, (1, 0, 2)).reshape(D_in, EH)        # (D_in, E*H)
    b1_cat = b1.reshape(1, EH)                                     # (1, E*H)
    w2_flat = w2.reshape(EH, D_out) * inv_e                        # fold mean
    b2_sum = jnp.sum(b2, axis=0, keepdims=True) * inv_e            # fold mean

    # Lane-dense padded output width (unmasked vst in the kernel).
    D_pad = _round_up(D_out, 128)

    # K-chunk over the E*H axis: multiple of 128, bounded so weight chunks +
    # the (bt, tk) hidden activation + the (bt, D_pad) accumulator fit VMEM
    # comfortably even on v7x (64 MiB physical / 32 MiB default scoped).
    EH_128 = _round_up(EH, 128)
    if EH_128 <= max_k_chunk:
        tk = EH_128
    else:
        tk = max_k_chunk
        for cand in range(max_k_chunk, 0, -128):   # prefer a chunk dividing EH_128
            if EH_128 % cand == 0:
                tk = cand
                break
    EH_pad = _round_up(EH, tk)

    # Zero-pad the (member, hidden) axis: padded columns give relu(0)=0 hidden
    # activations against zero W2 rows -> contribute exactly 0 to the sum.
    if EH_pad != EH:
        w1_cat = jnp.pad(w1_cat, ((0, 0), (0, EH_pad - EH)))
        b1_cat = jnp.pad(b1_cat, ((0, 0), (0, EH_pad - EH)))
        w2_flat = jnp.pad(w2_flat, ((0, EH_pad - EH), (0, 0)))
    if D_pad != D_out:
        w2_flat = jnp.pad(w2_flat, ((0, 0), (0, D_pad - D_out)))
        b2_sum = jnp.pad(b2_sum, ((0, 0), (0, D_pad - D_out)))

    # bf16 weights feed the MXU at native rate; biases stay f32 (f32 epilogue).
    return dict(
        w1_cat=w1_cat.astype(jnp.bfloat16),
        b1_cat=b1_cat.astype(jnp.float32),
        w2_flat=w2_flat.astype(jnp.bfloat16),
        b2_sum=b2_sum.astype(jnp.float32),
        d_in=D_in, d_out=D_out, d_pad=D_pad,
        eh_pad=EH_pad, tk=tk, n_k=EH_pad // tk,
    )


# --------------------------------------------------------------------------- #
# Forward wrapper
# --------------------------------------------------------------------------- #
def _pick_batch_tile(B, block_b):
    if B <= 8:
        return B
    # >= 2 batch grid steps whenever B allows, so ("parallel",) engages both
    # v7x TensorCores; tiles stay multiples of 8 sublanes.
    return min(block_b, _round_up(pl.cdiv(B, 2), 8))


def _vmem_limit_bytes(bt, d_in, tk, d_pad, n_k, x_itemsize, out_itemsize):
    wbuf = 1 if n_k == 1 else 2              # weight chunk buffer count
    need = (
        2 * bt * d_in * x_itemsize           # x tile (double buffered)
        + wbuf * d_in * tk * 2               # W1 chunk (bf16)
        + wbuf * 8 * tk * 4                  # b1 chunk (f32, sublane-padded)
        + wbuf * tk * d_pad * 2              # W2 chunk (bf16)
        + 8 * d_pad * 4                      # b2 (f32, sublane-padded)
        + 2 * bt * d_pad * out_itemsize      # output tile
        + bt * d_pad * 4                     # f32 accumulator scratch
        + bt * tk * 4                        # (bt, tk) f32 hidden activation
    )
    return int(min(max(int(need * 1.5) + (2 << 20), 16 << 20), 64 << 20))


def _build_and_call(x, p, bt, use_buffered):
    B = x.shape[0]
    d_in, d_pad, tk, n_k = p["d_in"], p["d_pad"], p["tk"], p["n_k"]
    grid = (pl.cdiv(B, bt), n_k)

    def spec(shape, idx, constant):
        if constant and use_buffered:
            # Constant index -> never re-DMA'd; a single resident buffer halves
            # its VMEM footprint with zero perf cost.
            return pl.BlockSpec(shape, idx, pipeline_mode=pl.Buffered(1))
        return pl.BlockSpec(shape, idx)

    weights_const = (n_k == 1)
    in_specs = [
        pl.BlockSpec((bt, d_in), lambda i, k: (i, 0)),                 # x tile
        spec((d_in, tk), lambda i, k: (0, k), weights_const),          # W1 chunk
        spec((1, tk), lambda i, k: (0, k), weights_const),             # b1 chunk
        spec((tk, d_pad), lambda i, k: (k, 0), weights_const),         # W2 chunk
        spec((1, d_pad), lambda i, k: (0, 0), True),                   # b2 (const)
    ]
    out_spec = pl.BlockSpec((bt, d_pad), lambda i, k: (i, 0))

    weight_bytes = (p["w1_cat"].size * 2 + p["b1_cat"].size * 4
                    + p["w2_flat"].size * 2 + p["b2_sum"].size * 4)
    cost = pl.CostEstimate(
        flops=int(2 * B * p["eh_pad"] * (d_in + d_pad)),
        transcendentals=0,
        bytes_accessed=int(x.size * x.dtype.itemsize + weight_bytes
                           + B * d_pad * x.dtype.itemsize),
    )

    return pl.pallas_call(
        _ensemble_fused_kernel,
        out_shape=jax.ShapeDtypeStruct((B, d_pad), x.dtype),
        grid_spec=pltpu.PrefetchScalarGridSpec(
            num_scalar_prefetch=0,
            grid=grid,
            in_specs=in_specs,
            out_specs=out_spec,
            scratch_shapes=[pltpu.VMEM((bt, d_pad), jnp.float32)],
        ),
        compiler_params=pltpu.CompilerParams(
            # batch tiles independent; K-chunk axis is a reduction (accumulator)
            dimension_semantics=("parallel", "arbitrary"),
            vmem_limit_bytes=_vmem_limit_bytes(
                bt, d_in, tk, d_pad, n_k, x.dtype.itemsize, x.dtype.itemsize),
        ),
        cost_estimate=cost,
    )(x, p["w1_cat"], p["b1_cat"], p["w2_flat"], p["b2_sum"])


def ensemble_forward(x, params, *, block_b=256):
    """Mean over ensemble members of MLP(x) == EnsembleModel.forward.

    x: (B, D_in); params: output of prepare_ensemble_params().
    (block_b: keep <= 256 on v7x; 512 is fine on v5e/v6e which have 128 MiB VMEM.)
    """
    B = x.shape[0]
    bt = _pick_batch_tile(B, block_b)
    # Note on partial last batch tile (B % bt != 0): padded rows of the x tile
    # hold garbage but rows are fully independent (no cross-row reduction), and
    # the runtime drops out-of-bounds output rows -> safe by construction.
    try:
        out_pad = _build_and_call(x, params, bt, use_buffered=True)
    except Exception:
        # This jax build rejected pl.Buffered(1) on the top-level pipeline;
        # fall back to default double-buffering (identical math).
        out_pad = _build_and_call(x, params, bt, use_buffered=False)

    d_out, d_pad = params["d_out"], params["d_pad"]
    # Padded lane-dense store is the right call for the compute-bound case; the
    # slice below is skipped entirely when D_out is already a multiple of 128.
    return out_pad[:, :d_out] if d_pad != d_out else out_pad


# --------------------------------------------------------------------------- #
# Reference + self-test
# --------------------------------------------------------------------------- #
def _reference(x, w1, b1, w2, b2):
    """Pure-JAX f32 reference mirroring torch.stack([m(x) for m in models]).mean(0)."""
    outs = []
    for e in range(w1.shape[0]):
        h = jnp.maximum(x @ w1[e] + b1[e], 0.0)
        outs.append(h @ w2[e] + b2[e])
    return jnp.mean(jnp.stack(outs, axis=0), axis=0)


if __name__ == "__main__":
    # Ensemble of 4 two-layer MLPs: batch=8, in=32, hidden=64, out=32.
    # (E*H = 256 -> lane-dense hidden activation, single K chunk.)
    E, B, D_in, H, D_out = 4, 8, 32, 64, 32

    key = jax.random.PRNGKey(0)
    kx, k1, k2, k3, k4 = jax.random.split(key, 5)

    x = jax.random.normal(kx, (B, D_in), dtype=jnp.float32)
    w1 = jax.random.normal(k1, (E, D_in, H), dtype=jnp.float32) * 0.1
    b1 = jax.random.normal(k2, (E, H), dtype=jnp.float32) * 0.1
    w2 = jax.random.normal(k3, (E, H, D_out), dtype=jnp.float32) * 0.1
    b2 = jax.random.normal(k4, (E, D_out), dtype=jnp.float32) * 0.1

    # One-time weight prep (load-time in a real deployment), then the kernel.
    params = prepare_ensemble_params(w1, b1, w2, b2)
    out = ensemble_forward(x, params)
    out = jax.block_until_ready(out)

    ref = _reference(x, w1, b1, w2, b2)
    assert out.shape == (B, D_out)
    # bf16 MXU feed -> looser tolerance than pure-f32 (f32 accumulation kept).
    assert jnp.allclose(out, ref, atol=3e-2, rtol=3e-2), "mismatch vs reference"

    print("KERNEL_OK")
</pallas_src>

<mosaic_0001>
module attributes {stable_mosaic.version = 11 : i64} {
  func.func @_ensemble_fused_kernel(%arg0: i32, %arg1: i32, %arg2: memref<8x32xf32, #tpu.memory_space<vmem>>, %arg3: memref<32x256xbf16, #tpu.memory_space<vmem>>, %arg4: memref<1x256xf32, #tpu.memory_space<vmem>>, %arg5: memref<256x128xbf16, #tpu.memory_space<vmem>>, %arg6: memref<1x128xf32, #tpu.memory_space<vmem>>, %arg7: memref<8x128xf32, #tpu.memory_space<vmem>>, %arg8: memref<8x128xf32, #tpu.memory_space<vmem>>) attributes {dimension_semantics = [#tpu.dimension_semantics<parallel>, #tpu.dimension_semantics<arbitrary>], iteration_bounds = array<i64: 1, 1>, scalar_prefetch = 0 : i64, scratch_operands = 1 : i64, tpu.core_type = #tpu.core_type<tc>, window_params = [{transform_indices = @transform_0, window_bounds = array<i64: 8, 32>}, {pipeline_mode = #tpu.pipeline_mode<synchronous>, transform_indices = @transform_1, window_bounds = array<i64: 32, 256>}, {pipeline_mode = #tpu.pipeline_mode<synchronous>, transform_indices = @transform_2, window_bounds = array<i64: 1, 256>}, {pipeline_mode = #tpu.pipeline_mode<synchronous>, transform_indices = @transform_3, window_bounds = array<i64: 256, 128>}, {pipeline_mode = #tpu.pipeline_mode<synchronous>, transform_indices = @transform_4, window_bounds = array<i64: 1, 128>}, {transform_indices = @transform_5, window_bounds = array<i64: 8, 128>}]} {
    %c0_i32 = arith.constant 0 : i32
    %0 = arith.cmpi eq, %arg1, %c0_i32 : i32
    %1 = arith.extui %0 : i1 to i32
    %c0_i32_0 = arith.constant 0 : i32
    %2 = arith.cmpi ne, %1, %c0_i32_0 : i32
    scf.if %2 {
      %cst_16 = arith.constant 0.000000e+00 : f32
      %21 = vector.broadcast %cst_16 : f32 to vector<8x128xf32>
      %c0_17 = arith.constant 0 : index
      %c0_18 = arith.constant 0 : index
      %22 = vector.load %arg8[%c0_17, %c0_18] : memref<8x128xf32, #tpu.memory_space<vmem>>, vector<8x128xf32>
      tpu.vector_store %arg8[%c0_17, %c0_18], %21 {strides = array<i32>} : memref<8x128xf32, #tpu.memory_space<vmem>>, vector<8x128xf32>,
    } else {
    }
    %c0 = arith.constant 0 : index
    %c0_1 = arith.constant 0 : index
    %3 = vector.load %arg2[%c0, %c0_1] : memref<8x32xf32, #tpu.memory_space<vmem>>, vector<8x32xf32>
    %4 = arith.truncf %3 : vector<8x32xf32> to vector<8x32xbf16>
    %c0_2 = arith.constant 0 : index
    %c0_3 = arith.constant 0 : index
    %5 = vector.load %arg3[%c0_2, %c0_3] : memref<32x256xbf16, #tpu.memory_space<vmem>>, vector<32x256xbf16>
    %cst = arith.constant dense<0.000000e+00> : vector<8x256xf32>
    %6 = tpu.matmul %4, %5, %cst {dimension_numbers = #tpu.dot_dimension_numbers<[1], [0], [0], [1], [0, 0, 1, 1], [], []>} : vector<8x32xbf16>, vector<32x256xbf16>, vector<8x256xf32> -> vector<8x256xf32>
    %c0_4 = arith.constant 0 : index
    %c0_5 = arith.constant 0 : index
    %7 = vector.load %arg4[%c0_4, %c0_5] : memref<1x256xf32, #tpu.memory_space<vmem>>, vector<1x256xf32>
    %8 = vector.broadcast %7 : vector<1x256xf32> to vector<8x256xf32>
    %9 = arith.addf %6, %8 : vector<8x256xf32>
    %cst_6 = arith.constant 0.000000e+00 : f32
    %10 = vector.broadcast %cst_6 : f32 to vector<8x256xf32>
    %11 = arith.maximumf %9, %10 : vector<8x256xf32>
    %c0_7 = arith.constant 0 : index
    %c0_8 = arith.constant 0 : index
    %12 = vector.load %arg8[%c0_7, %c0_8] : memref<8x128xf32, #tpu.memory_space<vmem>>, vector<8x128xf32>
    %13 = arith.truncf %11 : vector<8x256xf32> to vector<8x256xbf16>
    %c0_9 = arith.constant 0 : index
    %c0_10 = arith.constant 0 : index
    %14 = vector.load %arg5[%c0_9, %c0_10] : memref<256x128xbf16, #tpu.memory_space<vmem>>, vector<256x128xbf16>
    %cst_11 = arith.constant dense<0.000000e+00> : vector<8x128xf32>
    %15 = tpu.matmul %13, %14, %cst_11 {dimension_numbers = #tpu.dot_dimension_numbers<[1], [0], [0], [1], [0, 0, 1, 1], [], []>} : vector<8x256xbf16>, vector<256x128xbf16>, vector<8x128xf32> -> vector<8x128xf32>
    %16 = arith.addf %12, %15 : vector<8x128xf32>
    %c0_12 = arith.constant 0 : index
    %c0_13 = arith.constant 0 : index
    %17 = vector.load %arg8[%c0_12, %c0_13] : memref<8x128xf32, #tpu.memory_space<vmem>>, vector<8x128xf32>
    tpu.vector_store %arg8[%c0_12, %c0_13], %16 {strides = array<i32>} : memref<8x128xf32, #tpu.memory_space<vmem>>, vector<8x128xf32>,
    %c0_i32_14 = arith.constant 0 : i32
    %18 = arith.cmpi eq, %arg1, %c0_i32_14 : i32
    %19 = arith.extui %18 : i1 to i32
    %c0_i32_15 = arith.constant 0 : i32
    %20 = arith.cmpi ne, %19, %c0_i32_15 : i32
    scf.if %20 {
      %c0_16 = arith.constant 0 : index
      %c0_17 = arith.constant 0 : index
      %21 = vector.load %arg8[%c0_16, %c0_17] : memref<8x128xf32, #tpu.memory_space<vmem>>, vector<8x128xf32>
      %c0_18 = arith.constant 0 : index
      %c0_19 = arith.constant 0 : index
      %22 = vector.load %arg6[%c0_18, %c0_19] : memref<1x128xf32, #tpu.memory_space<vmem>>, vector<1x128xf32>
      %23 = vector.broadcast %22 : vector<1x128xf32> to vector<8x128xf32>
      %24 = arith.addf %21, %23 : vector<8x128xf32>
      %c0_20 = arith.constant 0 : index
      %c0_21 = arith.constant 0 : index
      %25 = vector.load %arg7[%c0_20, %c0_21] : memref<8x128xf32, #tpu.memory_space<vmem>>, vector<8x128xf32>
      tpu.vector_store %arg7[%c0_20, %c0_21], %24 {strides = array<i32>} : memref<8x128xf32, #tpu.memory_space<vmem>>, vector<8x128xf32>,
    } else {
    }
    return
  }
  func.func @transform_0(%arg0: i32, %arg1: i32) -> (i32, i32) {
    %c0_i32 = arith.constant 0 : i32
    %c0_i32_0 = arith.constant 0 : i32
    return %arg0, %c0_i32 : i32, i32
  }
  func.func @transform_1(%arg0: i32, %arg1: i32) -> (i32, i32) {
    %c0_i32 = arith.constant 0 : i32
    %c0_i32_0 = arith.constant 0 : i32
    return %c0_i32, %arg1 : i32, i32
  }
  func.func @transform_2(%arg0: i32, %arg1: i32) -> (i32, i32) {
    %c0_i32 = arith.constant 0 : i32
    %c0_i32_0 = arith.constant 0 : i32
    return %c0_i32, %arg1 : i32, i32
  }
  func.func @transform_3(%arg0: i32, %arg1: i32) -> (i32, i32) {
    %c0_i32 = arith.constant 0 : i32
    %c0_i32_0 = arith.constant 0 : i32
    return %arg1, %c0_i32 : i32, i32
  }
  func.func @transform_4(%arg0: i32, %arg1: i32) -> (i32, i32) {
    %c0_i32 = arith.constant 0 : i32
    %c0_i32_0 = arith.constant 0 : i32
    %c0_i32_1 = arith.constant 0 : i32
    return %c0_i32, %c0_i32_0 : i32, i32
  }
  func.func @transform_5(%arg0: i32, %arg1: i32) -> (i32, i32) {
    %c0_i32 = arith.constant 0 : i32
    %c0_i32_0 = arith.constant 0 : i32
    return %arg0, %c0_i32 : i32, i32
  }
}

module attributes {stable_mosaic.version = 11 : i64} {
  func.func @_ensemble_fused_kernel(%arg0: i32, %arg1: i32, %arg2: memref<8x32xf32, #tpu.memory_space<vmem>>, %arg3: memref<32x256xbf16, #tpu.memory_space<vmem>>, %arg4: memref<1x256xf32, #tpu.memory_space<vmem>>, %arg5: memref<256x128xbf16, #tpu.memory_space<vmem>>, %arg6: memref<1x128xf32, #tpu.memory_space<vmem>>, %arg7: memref<8x128xf32, #tpu.memory_space<vmem>>, %arg8: memref<8x128xf32, #tpu.memory_space<vmem>>) attributes {dimension_semantics = [#tpu.dimension_semantics<parallel>, #tpu.dimension_semantics<arbitrary>], iteration_bounds = array<i64: 1, 1>, scalar_prefetch = 0 : i64, scratch_operands = 1 : i64, tpu.core_type = #tpu.core_type<tc>, window_params = [{transform_indices = @transform_0, window_bounds = array<i64: 8, 32>}, {transform_indices = @transform_1, window_bounds = array<i64: 32, 256>}, {transform_indices = @transform_2, window_bounds = array<i64: 1, 256>}, {transform_indices = @transform_3, window_bounds = array<i64: 256, 128>}, {pipeline_mode = #tpu.pipeline_mode<synchronous>, transform_indices = @transform_4, window_bounds = array<i64: 1, 128>}, {transform_indices = @transform_5, window_bounds = array<i64: 8, 128>}]} {
    %c0_i32 = arith.constant 0 : i32
    %0 = arith.cmpi eq, %arg1, %c0_i32 : i32
    %1 = arith.extui %0 : i1 to i32
    %c0_i32_0 = arith.constant 0 : i32
    %2 = arith.cmpi ne, %1, %c0_i32_0 : i32
    scf.if %2 {
      %cst_16 = arith.constant 0.000000e+00 : f32
      %21 = vector.broadcast %cst_16 : f32 to vector<8x128xf32>
      %c0_17 = arith.constant 0 : index
      %c0_18 = arith.constant 0 : index
      %22 = vector.load %arg8[%c0_17, %c0_18] : memref<8x128xf32, #tpu.memory_space<vmem>>, vector<8x128xf32>
      tpu.vector_store %arg8[%c0_17, %c0_18], %21 {strides = array<i32>} : memref<8x128xf32, #tpu.memory_space<vmem>>, vector<8x128xf32>,
    } else {
    }
    %c0 = arith.constant 0 : index
    %c0_1 = arith.constant 0 : index
    %3 = vector.load %arg2[%c0, %c0_1] : memref<8x32xf32, #tpu.memory_space<vmem>>, vector<8x32xf32>
    %4 = arith.truncf %3 : vector<8x32xf32> to vector<8x32xbf16>
    %c0_2 = arith.constant 0 : index
    %c0_3 = arith.constant 0 : index
    %5 = vector.load %arg3[%c0_2, %c0_3] : memref<32x256xbf16, #tpu.memory_space<vmem>>, vector<32x256xbf16>
    %cst = arith.constant dense<0.000000e+00> : vector<8x256xf32>
    %6 = tpu.matmul %4, %5, %cst {dimension_numbers = #tpu.dot_dimension_numbers<[1], [0], [0], [1], [0, 0, 1, 1], [], []>} : vector<8x32xbf16>, vector<32x256xbf16>, vector<8x256xf32> -> vector<8x256xf32>
    %c0_4 = arith.constant 0 : index
    %c0_5 = arith.constant 0 : index
    %7 = vector.load %arg4[%c0_4, %c0_5] : memref<1x256xf32, #tpu.memory_space<vmem>>, vector<1x256xf32>
    %8 = vector.broadcast %7 : vector<1x256xf32> to vector<8x256xf32>
    %9 = arith.addf %6, %8 : vector<8x256xf32>
    %cst_6 = arith.constant 0.000000e+00 : f32
    %10 = vector.broadcast %cst_6 : f32 to vector<8x256xf32>
    %11 = arith.maximumf %9, %10 : vector<8x256xf32>
    %c0_7 = arith.constant 0 : index
    %c0_8 = arith.constant 0 : index
    %12 = vector.load %arg8[%c0_7, %c0_8] : memref<8x128xf32, #tpu.memory_space<vmem>>, vector<8x128xf32>
    %13 = arith.truncf %11 : vector<8x256xf32> to vector<8x256xbf16>
    %c0_9 = arith.constant 0 : index
    %c0_10 = arith.constant 0 : index
    %14 = vector.load %arg5[%c0_9, %c0_10] : memref<256x128xbf16, #tpu.memory_space<vmem>>, vector<256x128xbf16>
    %cst_11 = arith.constant dense<0.000000e+00> : vector<8x128xf32>
    %15 = tpu.matmul %13, %14, %cst_11 {dimension_numbers = #tpu.dot_dimension_numbers<[1], [0], [0], [1], [0, 0, 1, 1], [], []>} : vector<8x256xbf16>, vector<256x128xbf16>, vector<8x128xf32> -> vector<8x128xf32>
    %16 = arith.addf %12, %15 : vector<8x128xf32>
    %c0_12 = arith.constant 0 : index
    %c0_13 = arith.constant 0 : index
    %17 = vector.load %arg8[%c0_12, %c0_13] : memref<8x128xf32, #tpu.memory_space<vmem>>, vector<8x128xf32>
    tpu.vector_store %arg8[%c0_12, %c0_13], %16 {strides = array<i32>} : memref<8x128xf32, #tpu.memory_space<vmem>>, vector<8x128xf32>,
    %c0_i32_14 = arith.constant 0 : i32
    %18 = arith.cmpi eq, %arg1, %c0_i32_14 : i32
    %19 = arith.extui %18 : i1 to i32
    %c0_i32_15 = arith.constant 0 : i32
    %20 = arith.cmpi ne, %19, %c0_i32_15 : i32
    scf.if %20 {
      %c0_16 = arith.constant 0 : index
      %c0_17 = arith.constant 0 : index
      %21 = vector.load %arg8[%c0_16, %c0_17] : memref<8x128xf32, #tpu.memory_space<vmem>>, vector<8x128xf32>
      %c0_18 = arith.constant 0 : index
      %c0_19 = arith.constant 0 : index
      %22 = vector.load %arg6[%c0_18, %c0_19] : memref<1x128xf32, #tpu.memory_space<vmem>>, vector<1x128xf32>
      %23 = vector.broadcast %22 : vector<1x128xf32> to vector<8x128xf32>
      %24 = arith.addf %21, %23 : vector<8x128xf32>
      %c0_20 = arith.constant 0 : index
      %c0_21 = arith.constant 0 : index
      %25 = vector.load %arg7[%c0_20, %c0_21] : memref<8x128xf32, #tpu.memory_space<vmem>>, vector<8x128xf32>
      tpu.vector_store %arg7[%c0_20, %c0_21], %24 {strides = array<i32>} : memref<8x128xf32, #tpu.memory_space<vmem>>, vector<8x128xf32>,
    } else {
    }
    return
  }
  func.func @transform_0(%arg0: i32, %arg1: i32) -> (i32, i32) {
    %c0_i32 = arith.constant 0 : i32
    %c0_i32_0 = arith.constant 0 : i32
    return %arg0, %c0_i32 : i32, i32
  }
  func.func @transform_1(%arg0: i32, %arg1: i32) -> (i32, i32) {
    %c0_i32 = arith.constant 0 : i32
    %c0_i32_0 = arith.constant 0 : i32
    return %c0_i32, %arg1 : i32, i32
  }
  func.func @transform_2(%arg0: i32, %arg1: i32) -> (i32, i32) {
    %c0_i32 = arith.constant 0 : i32
    %c0_i32_0 = arith.constant 0 : i32
    return %c0_i32, %arg1 : i32, i32
  }
  func.func @transform_3(%arg0: i32, %arg1: i32) -> (i32, i32) {
    %c0_i32 = arith.constant 0 : i32
    %c0_i32_0 = arith.constant 0 : i32
    return %arg1, %c0_i32 : i32, i32
  }
  func.func @transform_4(%arg0: i32, %arg1: i32) -> (i32, i32) {
    %c0_i32 = arith.constant 0 : i32
    %c0_i32_0 = arith.constant 0 : i32
    %c0_i32_1 = arith.constant 0 : i32
    return %c0_i32, %c0_i32_0 : i32, i32
  }
  func.func @transform_5(%arg0: i32, %arg1: i32) -> (i32, i32) {
    %c0_i32 = arith.constant 0 : i32
    %c0_i32_0 = arith.constant 0 : i32
    return %arg0, %c0_i32 : i32, i32
  }
}

</mosaic_0001>

<llo_original>
// kernel: tpu_custom_call.1
$region0: #{tpu_custom_call.1}
  #allocation0 [shape = 'u32[]', space=smem, size = 0x4, offset = 0x4, fixed_abs, tag = 'smem constant byte address 0x4 - core index']
  #allocation1 [shape = 'u32[144,128]{1,0:T(1,128)}', space=vmem, size = 0x12000, scoped, tag = 'internal scratch']
  #allocation2 [shape = 'f32[8,128]{1,0:T(8,128)}', space=vmem, size = 0x1000, scoped, tag = 'scratch operand']
  %s0 = inlined_call_operand.hbm [shape: f32[8,32], index: 0, kind: input, shape index: {}]
  %s1 = inlined_call_operand.hbm [shape: bf16[32,256], index: 1, kind: input, shape index: {}]
  %s2 = inlined_call_operand.vmem [shape: f32[1,256], index: 2, kind: input, shape index: {}]
  %s3 = inlined_call_operand.hbm [shape: bf16[256,128], index: 3, kind: input, shape index: {}]
  %s4 = inlined_call_operand.vmem [shape: f32[1,128], index: 4, kind: input, shape index: {}]
  %s5 = inlined_call_operand.hbm [shape: f32[8,128], index: 5, kind: output, shape index: {}]
  %s6 = sld [smem:[#allocation0]]
  $region50: #{tpu_custom_call.1} parent=0
    _
  %s8 = ssub.s32 1, %s6
  %s9 = scalar_select 0, %s8, %s6
  $region1: #{tpu_custom_call.1} parent=0
    #allocation3 [shape = 'u8[4096]{0}', space=vmem, size = 0x1000, scoped, tag = 'input window, operand 0, single buffered']
    #allocation4 [shape = 's32[1]{0}', space=sflag, size = 0x4, scoped, tag = 'scoped memory for tpu_custom_call.1']
    #allocation5 [shape = 's32[1]{0}', space=sflag, size = 0x4, scoped, tag = 'scoped memory for tpu_custom_call.1']
    #allocation6 [shape = 'u8[16384]{0}', space=vmem, size = 0x4000, scoped, tag = 'input window, operand 1, single buffered']
    #allocation7 [shape = 's32[1]{0}', space=sflag, size = 0x4, scoped, tag = 'scoped memory for tpu_custom_call.1']
    #allocation8 [shape = 'u8[65536]{0}', space=vmem, size = 0x10000, scoped, tag = 'input window, operand 3, single buffered']
    #allocation9 [shape = 'u8[4096]{0}', space=vmem, size = 0x1000, scoped, tag = 'output window, operand 0, single buffered']
    %10 = vsyncpa [#allocation4], 0
    %11 = vsyncpa [#allocation7], 0
    %12 = vsyncpa [#allocation5], 0
    // Predicated region
    $region2: #{tpu_custom_call.1} parent=1 // pred_check
      _
    $region3: #{tpu_custom_call.1} parent=1 // pred_check_branch
      %14 = sbr.rel (0) target = $region5
    $region4: #{tpu_custom_call.1} parent=1 // pred_region
      %s16 = ssub.s32 128, 128
      %17 = vsyncadd [#allocation4], %s16
      %s19 = sshll.u32 [#allocation3], 4
      %s20 = int_to_ptr.vmem [resolvable:$true] %s19
      %22 = dma.hbm_to_vmem [thread:$0]  %s0, 128, %s20, [#allocation4]
    $region5: #{tpu_custom_call.1} parent=1 // pred_fallthru
      _
    // Predicated region
    $region6: #{tpu_custom_call.1} parent=1 // pred_check
      _
    $region7: #{tpu_custom_call.1} parent=1 // pred_check_branch
      %24 = sbr.rel (0) target = $region9
    $region8: #{tpu_custom_call.1} parent=1 // pred_region
      %s26 = ssub.s32 512, 512
      %27 = vsyncadd [#allocation7], %s26
      %s28 = sshll.u32 [#allocation6], 4
      %s29 = int_to_ptr.vmem [resolvable:$true] %s28
      %34 = dma.hbm_to_vmem [thread:$0]  %s1, 512, %s29, [#allocation7], 128, 128, 8
    $region9: #{tpu_custom_call.1} parent=1 // pred_fallthru
      _
    // Predicated region
    $region10: #{tpu_custom_call.1} parent=1 // pred_check
      _
    $region11: #{tpu_custom_call.1} parent=1 // pred_check_branch
      %36 = sbr.rel (0) target = $region13
    $region12: #{tpu_custom_call.1} parent=1 // pred_region
      _
    $region13: #{tpu_custom_call.1} parent=1 // pred_fallthru
      _
    // Predicated region
    $region14: #{tpu_custom_call.1} parent=1 // pred_check
      _
    $region15: #{tpu_custom_call.1} parent=1 // pred_check_branch
      %38 = sbr.rel (0) target = $region17
    $region16: #{tpu_custom_call.1} parent=1 // pred_region
      %s40 = ssub.s32 2048, 2048
      %41 = vsyncadd [#allocation7], %s40
      %s42 = sshll.u32 [#allocation8], 4
      %s43 = int_to_ptr.vmem [resolvable:$true] %s42
      %48 = dma.hbm_to_vmem [thread:$0]  %s3, 2048, %s43, [#allocation7], 64, 64, 4
    $region17: #{tpu_custom_call.1} parent=1 // pred_fallthru
      _
    // Predicated region
    $region18: #{tpu_custom_call.1} parent=1 // pred_check
      _
    $region19: #{tpu_custom_call.1} parent=1 // pred_check_branch
      %50 = sbr.rel (0) target = $region21
    $region20: #{tpu_custom_call.1} parent=1 // pred_region
      _
    $region21: #{tpu_custom_call.1} parent=1 // pred_fallthru
      _
    // Predicated region
    $region22: #{tpu_custom_call.1} parent=1 // pred_check
      _
    $region23: #{tpu_custom_call.1} parent=1 // pred_check_branch
      %52 = sbr.rel (0) target = $region25
    $region24: #{tpu_custom_call.1} parent=1 // pred_region
      %53 = dma.done [#allocation4], 128
    $region25: #{tpu_custom_call.1} parent=1 // pred_fallthru
      _
    // Predicated region
    $region26: #{tpu_custom_call.1} parent=1 // pred_check
      _
    $region27: #{tpu_custom_call.1} parent=1 // pred_check_branch
      %55 = sbr.rel (0) target = $region29
    $region28: #{tpu_custom_call.1} parent=1 // pred_region
      %56 = dma.done [#allocation7], 512
    $region29: #{tpu_custom_call.1} parent=1 // pred_fallthru
      _
    // Predicated region
    $region30: #{tpu_custom_call.1} parent=1 // pred_check
      _
    $region31: #{tpu_custom_call.1} parent=1 // pred_check_branch
      %58 = sbr.rel (0) target = $region33
    $region32: #{tpu_custom_call.1} parent=1 // pred_region
      %59 = dma.done [#allocation7], 2048
    $region33: #{tpu_custom_call.1} parent=1 // pred_fallthru
      _
    %p61 = scmp.eq.s32.totalorder 0, 0
    // Predicated region
    $region34: #{tpu_custom_call.1} parent=1 // pred_check
      %p62 = pneg %p61
    $region35: #{tpu_custom_call.1} parent=1 // pred_check_branch
      %64 = sbr.rel (%p62) target = $region37
    $region36: #{tpu_custom_call.1} parent=1 // pred_region
      %65 = vst [vmem:[#allocation2] sm:$0xff] 0.0
    $region37: #{tpu_custom_call.1} parent=1 // pred_fallthru
      _
    %v66 = vld [vmem:[#allocation3] sm:$0xff]
    %v67 = vpack.c.bf16 %v66, %v66
    %v68 = vld [vmem:[#allocation6] sm:$0xff]
    %v69 = vld [vmem:[#allocation6 + $0x8] sm:$0xff]
    %v70 = vld [vmem:[#allocation6 + $0x10] sm:$0xff]
    %v71 = vld [vmem:[#allocation6 + $0x18] sm:$0xff]
    %v72 = vld [vmem:[%s2] sm:$0x3]
    %v74 = vlaneseq
    %v75 = vshrl.u32 %v74, 7
    %v76 = vsub.s32 0, %v75
    %v77 = vrot.slane %v72, %v76
    %v78 = vlaneseq
    %v79 = vshrl.u32 %v78, 7
    %v80 = vsub.s32 1, %v79
    %v81 = vrot.slane %v72, %v80
    %v88 = vunpack.c.l.b16 %v68
    %v89 = vunpack.c.h.b16 %v68
    %v90 = vunpack.c.l.b16 %v69
    %v91 = vunpack.c.h.b16 %v69
    %v92 = vunpack.c.l.b16 %v70
    %v93 = vunpack.c.h.b16 %v70
    %v94 = vunpack.c.l.b16 %v71
    %v95 = vunpack.c.h.b16 %v71
    %v96 = vpack.c.b16 %v90, %v88
    %v97 = vpack.c.b16 %v91, %v89
    %v98 = vpack.c.b16 %v94, %v92
    %v99 = vpack.c.b16 %v95, %v93
    %vm104 = vcmask 261120
    %v106 = vsel %vm104, %v67, 0
    %108 = vmatprep.subr.bf16.mxu0 %v97
    %109 = vmatpush1.bf16.msra.mxu0 %v96
    %110 = vmatprep.subr.bf16.mxu0 %v99
    %111 = vmatpush1.bf16.msra.mxu0 %v98
    %112 = vmatprep.subr.bf16.mxu0 0
    %113 = vmatpush1.bf16.msra.mxu0 0
    %114 = vmatprep.subr.bf16.mxu0 0
    %115 = vmatpush1.bf16.msra.mxu0 0
    %116 = vmatprep.subr.bf16.mxu0 0
    %117 = vmatpush1.bf16.msra.mxu0 0
    %118 = vmatprep.subr.bf16.mxu0 0
    %119 = vmatpush1.bf16.msra.mxu0 0
    %120 = vmatprep.subr.bf16.mxu0 0
    %121 = vmatpush1.bf16.msra.mxu0 0
    %122 = vmatprep.subr.bf16.mxu0 0
    %123 = vmatpush1.bf16.msra.mxu0 0
    %124 = vmatprep.subr.bf16.mxu0 0
    %125 = vmatpush1.bf16.msra.mxu0 0
    %126 = vmatprep.subr.bf16.mxu0 0
    %127 = vmatpush1.bf16.msra.mxu0 0
    %128 = vmatprep.subr.bf16.mxu0 0
    %129 = vmatpush1.bf16.msra.mxu0 0
    %130 = vmatprep.subr.bf16.mxu0 0
    %131 = vmatpush1.bf16.msra.mxu0 0
    %132 = vmatprep.subr.bf16.mxu0 0
    %133 = vmatpush1.bf16.msra.mxu0 0
    %134 = vmatprep.subr.bf16.mxu0 0
    %135 = vmatpush1.bf16.msra.mxu0 0
    %136 = vmatprep.subr.bf16.mxu0 0
    %137 = vmatpush1.bf16.msra.mxu0 0
    %138 = vmatprep.subr.bf16.mxu0 0
    %139 = vmatpush1.bf16.msra.mxu0 0
    %140 = vmatprep.mubr.bf16.mxu0 0
    %141 = vmatmul.mubr.bf16.gmra.mrb[0].mxu0 %v106
    %v142 = vpop.f32.mrb[0].mxu0
    %v143 = vadd.f32 %v77, %v142
    %v144 = vpop.f32.mrb[0].mxu0
    %v145 = vadd.f32 %v81, %v144
    %v146 = vpop.f32.mrb[0].mxu0
    %v147 = vpop.f32.mrb[0].mxu0
    %148 = vdwg.mxu0
    %v149 = vmax.f32 %v143, 0.0
    %v150 = vmax.f32 %v145, 0.0
    %v151 = vld [vmem:[#allocation2] sm:$0xff]
    %v152 = vpack.c.bf16 %v149, %v149
    %v153 = vpack.c.bf16 %v150, %v150
    %v154 = vld [vmem:[#allocation8] sm:$0xf]
    %v155 = vld [vmem:[#allocation8 + $0x4] sm:$0xf]
    %v156 = vld [vmem:[#allocation8 + $0x8] sm:$0xf]
    %v157 = vld [vmem:[#allocation8 + $0xc] sm:$0xf]
    %v158 = vld [vmem:[#allocation8 + $0x10] sm:$0xf]
    %v159 = vld [vmem:[#allocation8 + $0x14] sm:$0xf]
    %v160 = vld [vmem:[#allocation8 + $0x18] sm:$0xf]
    %v161 = vld [vmem:[#allocation8 + $0x1c] sm:$0xf]
    %v162 = vld [vmem:[#allocation8 + $0x20] sm:$0xf]
    %v163 = vld [vmem:[#allocation8 + $0x24] sm:$0xf]
    %v164 = vld [vmem:[#allocation8 + $0x28] sm:$0xf]
    %v165 = vld [vmem:[#allocation8 + $0x2c] sm:$0xf]
    %v166 = vld [vmem:[#allocation8 + $0x30] sm:$0xf]
    %v167 = vld [vmem:[#allocation8 + $0x34] sm:$0xf]
    %v168 = vld [vmem:[#allocation8 + $0x38] sm:$0xf]
    %v169 = vld [vmem:[#allocation8 + $0x3c] sm:$0xf]
    %v170 = vld [vmem:[#allocation8 + $0x40] sm:$0xf]
    %v171 = vld [vmem:[#allocation8 + $0x44] sm:$0xf]
    %v172 = vld [vmem:[#allocation8 + $0x48] sm:$0xf]
    %v173 = vld [vmem:[#allocation8 + $0x4c] sm:$0xf]
    %v174 = vld [vmem:[#allocation8 + $0x50] sm:$0xf]
    %v175 = vld [vmem:[#allocation8 + $0x54] sm:$0xf]
    %v176 = vld [vmem:[#allocation8 + $0x58] sm:$0xf]
    %v177 = vld [vmem:[#allocation8 + $0x5c] sm:$0xf]
    %v178 = vld [vmem:[#allocation8 + $0x60] sm:$0xf]
    %v179 = vld [vmem:[#allocation8 + $0x64] sm:$0xf]
    %v180 = vld [vmem:[#allocation8 + $0x68] sm:$0xf]
    %v181 = vld [vmem:[#allocation8 + $0x6c] sm:$0xf]
    %v182 = vld [vmem:[#allocation8 + $0x70] sm:$0xf]
    %v183 = vld [vmem:[#allocation8 + $0x74] sm:$0xf]
    %v184 = vld [vmem:[#allocation8 + $0x78] sm:$0xf]
    %v185 = vld [vmem:[#allocation8 + $0x7c] sm:$0xf]
    %v218 = vunpack.c.l.b16 %v154
    %v219 = vunpack.c.l.b16 %v155
    %v220 = vunpack.c.l.b16 %v156
    %v221 = vunpack.c.l.b16 %v157
    %v222 = vunpack.c.l.b16 %v158
    %v223 = vunpack.c.l.b16 %v159
    %v224 = vunpack.c.l.b16 %v160
    %v225 = vunpack.c.l.b16 %v161
    %v226 = vunpack.c.l.b16 %v162
    %v227 = vunpack.c.l.b16 %v163
    %v228 = vunpack.c.l.b16 %v164
    %v229 = vunpack.c.l.b16 %v165
    %v230 = vunpack.c.l.b16 %v166
    %v231 = vunpack.c.l.b16 %v167
    %v232 = vunpack.c.l.b16 %v168
    %v233 = vunpack.c.l.b16 %v169
    %v234 = vunpack.c.l.b16 %v170
    %v235 = vunpack.c.l.b16 %v171
    %v236 = vunpack.c.l.b16 %v172
    %v237 = vunpack.c.l.b16 %v173
    %v238 = vunpack.c.l.b16 %v174
    %v239 = vunpack.c.l.b16 %v175
    %v240 = vunpack.c.l.b16 %v176
    %v241 = vunpack.c.l.b16 %v177
    %v242 = vunpack.c.l.b16 %v178
    %v243 = vunpack.c.l.b16 %v179
    %v244 = vunpack.c.l.b16 %v180
    %v245 = vunpack.c.l.b16 %v181
    %v246 = vunpack.c.l.b16 %v182
    %v247 = vunpack.c.l.b16 %v183
    %v248 = vunpack.c.l.b16 %v184
    %v249 = vunpack.c.l.b16 %v185
    %v250 = vpack.c.b16 %v219, %v218
    %v251 = vpack.c.b16 %v221, %v220
    %v252 = vpack.c.b16 %v223, %v222
    %v253 = vpack.c.b16 %v225, %v224
    %v254 = vpack.c.b16 %v227, %v226
    %v255 = vpack.c.b16 %v229, %v228
    %v256 = vpack.c.b16 %v231, %v230
    %v257 = vpack.c.b16 %v233, %v232
    %v258 = vpack.c.b16 %v235, %v234
    %v259 = vpack.c.b16 %v237, %v236
    %v260 = vpack.c.b16 %v239, %v238
    %v261 = vpack.c.b16 %v241, %v240
    %v262 = vpack.c.b16 %v243, %v242
    %v263 = vpack.c.b16 %v245, %v244
    %v264 = vpack.c.b16 %v247, %v246
    %v265 = vpack.c.b16 %v249, %v248
    %282 = vmatprep.subr.bf16.mxu0 0
    %283 = vmatpush1.bf16.msra.mxu0 %v250
    %284 = vmatprep.subr.bf16.mxu0 0
    %285 = vmatpush1.bf16.msra.mxu0 %v251
    %286 = vmatprep.subr.bf16.mxu0 0
    %287 = vmatpush1.bf16.msra.mxu0 %v252
    %288 = vmatprep.subr.bf16.mxu0 0
    %289 = vmatpush1.bf16.msra.mxu0 %v253
    %290 = vmatprep.subr.bf16.mxu0 0
    %291 = vmatpush1.bf16.msra.mxu0 %v254
    %292 = vmatprep.subr.bf16.mxu0 0
    %293 = vmatpush1.bf16.msra.mxu0 %v255
    %294 = vmatprep.subr.bf16.mxu0 0
    %295 = vmatpush1.bf16.msra.mxu0 %v256
    %296 = vmatprep.subr.bf16.mxu0 0
    %297 = vmatpush1.bf16.msra.mxu0 %v257
    %298 = vmatprep.subr.bf16.mxu0 0
    %299 = vmatpush1.bf16.msra.mxu0 %v258
    %300 = vmatprep.subr.bf16.mxu0 0
    %301 = vmatpush1.bf16.msra.mxu0 %v259
    %302 = vmatprep.subr.bf16.mxu0 0
    %303 = vmatpush1.bf16.msra.mxu0 %v260
    %304 = vmatprep.subr.bf16.mxu0 0
    %305 = vmatpush1.bf16.msra.mxu0 %v261
    %306 = vmatprep.subr.bf16.mxu0 0
    %307 = vmatpush1.bf16.msra.mxu0 %v262
    %308 = vmatprep.subr.bf16.mxu0 0
    %309 = vmatpush1.bf16.msra.mxu0 %v263
    %310 = vmatprep.subr.bf16.mxu0 0
    %311 = vmatpush1.bf16.msra.mxu0 %v264
    %312 = vmatprep.subr.bf16.mxu0 0
    %313 = vmatpush1.bf16.msra.mxu0 %v265
    %314 = vmatprep.mubr.bf16.mxu0 %v153
    %315 = vmatmul.mubr.bf16.gmra.mrb[0].mxu0 %v152
    %v316 = vpop.f32.mrb[0].mxu0
    %v317 = vadd.f32 0.0, %v316
    %v318 = vpop.f32.mrb[0].mxu0
    %v319 = vpop.f32.mrb[0].mxu0
    %v320 = vpop.f32.mrb[0].mxu0
    %321 = vdwg.mxu0
    %v322 = vadd.f32 %v151, %v317
    %323 = vst [vmem:[#allocation2] sm:$0xff] %v322
    // Predicated region
    $region38: #{tpu_custom_call.1} parent=1 // pred_check
      %p324 = pneg %p61
    $region39: #{tpu_custom_call.1} parent=1 // pred_check_branch
      %326 = sbr.rel (%p324) target = $region41
    $region40: #{tpu_custom_call.1} parent=1 // pred_region
      %v327 = vld [vmem:[#allocation2] sm:$0xff]
      %v328 = vld [vmem:[%s4] sm:$0x1]
      %v330 = vlaneseq
      %v331 = vshrl.u32 %v330, 7
      %v332 = vsub.s32 0, %v331
      %v333 = vrot.slane %v328, %v332
      %v335 = vadd.f32 %v327, %v333
      %336 = vst [vmem:[#allocation9] sm:$0xff] %v335
    $region41: #{tpu_custom_call.1} parent=1 // pred_fallthru
      _
    // Predicated region
    $region42: #{tpu_custom_call.1} parent=1 // pred_check
      _
    $region43: #{tpu_custom_call.1} parent=1 // pred_check_branch
      %338 = sbr.rel (0) target = $region45
    $region44: #{tpu_custom_call.1} parent=1 // pred_region
      %s340 = ssub.s32 128, 128
      %341 = vsyncadd [#allocation5], %s340
      %s343 = sshll.u32 [#allocation9], 4
      %s344 = int_to_ptr.vmem [resolvable:$true] %s343
      %346 = dma.vmem_to_hbm [thread:$0]  %s344, 128, %s5, [#allocation5]
    $region45: #{tpu_custom_call.1} parent=1 // pred_fallthru
      _
    // Predicated region
    $region46: #{tpu_custom_call.1} parent=1 // pred_check
      _
    $region47: #{tpu_custom_call.1} parent=1 // pred_check_branch
      %348 = sbr.rel (0) target = $region49
    $region48: #{tpu_custom_call.1} parent=1 // pred_region
      %349 = dma.done [#allocation5], 128
    $region49: #{tpu_custom_call.1} parent=1 // pred_fallthru
      _
    %350 = vsyncpa [#allocation4], 1
    %351 = vsyncpa [#allocation7], 1
    %352 = vsyncpa [#allocation5], 1

// kernel: tpu_custom_call.1
$region0: #{tpu_custom_call.1}
  #allocation0 [shape = 'u32[]', space=smem, size = 0x4, offset = 0x4, fixed_abs, tag = 'smem constant byte address 0x4 - core index']
  #allocation1 [shape = 'u32[144,128]{1,0:T(1,128)}', space=vmem, size = 0x12000, scoped, tag = 'internal scratch']
  #allocation2 [shape = 'f32[8,128]{1,0:T(8,128)}', space=vmem, size = 0x1000, scoped, tag = 'scratch operand']
  %s0 = inlined_call_operand.hbm [shape: f32[8,32], index: 0, kind: input, shape index: {}]
  %s1 = inlined_call_operand.hbm [shape: bf16[32,256], index: 1, kind: input, shape index: {}]
  %s2 = inlined_call_operand.vmem [shape: f32[1,256], index: 2, kind: input, shape index: {}]
  %s3 = inlined_call_operand.hbm [shape: bf16[256,128], index: 3, kind: input, shape index: {}]
  %s4 = inlined_call_operand.vmem [shape: f32[1,128], index: 4, kind: input, shape index: {}]
  %s5 = inlined_call_operand.hbm [shape: f32[8,128], index: 5, kind: output, shape index: {}]
  %s6 = sld [smem:[#allocation0]]
  $region50: #{tpu_custom_call.1} parent=0
    _
  %s8 = ssub.s32 1, %s6
  %s9 = scalar_select 0, %s8, %s6
  $region1: #{tpu_custom_call.1} parent=0
    #allocation3 [shape = 'u8[4096]{0}', space=vmem, size = 0x1000, scoped, tag = 'input window, operand 0, single buffered']
    #allocation4 [shape = 's32[1]{0}', space=sflag, size = 0x4, scoped, tag = 'scoped memory for tpu_custom_call.1']
    #allocation5 [shape = 's32[1]{0}', space=sflag, size = 0x4, scoped, tag = 'scoped memory for tpu_custom_call.1']
    #allocation6 [shape = 'u8[16384]{0}', space=vmem, size = 0x4000, scoped, tag = 'input window, operand 1, single buffered']
    #allocation7 [shape = 's32[1]{0}', space=sflag, size = 0x4, scoped, tag = 'scoped memory for tpu_custom_call.1']
    #allocation8 [shape = 'u8[65536]{0}', space=vmem, size = 0x10000, scoped, tag = 'input window, operand 3, single buffered']
    #allocation9 [shape = 'u8[4096]{0}', space=vmem, size = 0x1000, scoped, tag = 'output window, operand 0, single buffered']
    %10 = vsyncpa [#allocation4], 0
    %11 = vsyncpa [#allocation7], 0
    %12 = vsyncpa [#allocation5], 0
    // Predicated region
    $region2: #{tpu_custom_call.1} parent=1 // pred_check
      _
    $region3: #{tpu_custom_call.1} parent=1 // pred_check_branch
      %14 = sbr.rel (0) target = $region5
    $region4: #{tpu_custom_call.1} parent=1 // pred_region
      %s16 = ssub.s32 128, 128
      %17 = vsyncadd [#allocation4], %s16
      %s19 = sshll.u32 [#allocation3], 4
      %s20 = int_to_ptr.vmem [resolvable:$true] %s19
      %22 = dma.hbm_to_vmem [thread:$0]  %s0, 128, %s20, [#allocation4]
    $region5: #{tpu_custom_call.1} parent=1 // pred_fallthru
      _
    // Predicated region
    $region6: #{tpu_custom_call.1} parent=1 // pred_check
      _
    $region7: #{tpu_custom_call.1} parent=1 // pred_check_branch
      %24 = sbr.rel (0) target = $region9
    $region8: #{tpu_custom_call.1} parent=1 // pred_region
      %s26 = ssub.s32 512, 512
      %27 = vsyncadd [#allocation7], %s26
      %s28 = sshll.u32 [#allocation6], 4
      %s29 = int_to_ptr.vmem [resolvable:$true] %s28
      %34 = dma.hbm_to_vmem [thread:$0]  %s1, 512, %s29, [#allocation7], 128, 128, 8
    $region9: #{tpu_custom_call.1} parent=1 // pred_fallthru
      _
    // Predicated region
    $region10: #{tpu_custom_call.1} parent=1 // pred_check
      _
    $region11: #{tpu_custom_call.1} parent=1 // pred_check_branch
      %36 = sbr.rel (0) target = $region13
    $region12: #{tpu_custom_call.1} parent=1 // pred_region
      _
    $region13: #{tpu_custom_call.1} parent=1 // pred_fallthru
      _
    // Predicated region
    $region14: #{tpu_custom_call.1} parent=1 // pred_check
      _
    $region15: #{tpu_custom_call.1} parent=1 // pred_check_branch
      %38 = sbr.rel (0) target = $region17
    $region16: #{tpu_custom_call.1} parent=1 // pred_region
      %s40 = ssub.s32 2048, 2048
      %41 = vsyncadd [#allocation7], %s40
      %s42 = sshll.u32 [#allocation8], 4
      %s43 = int_to_ptr.vmem [resolvable:$true] %s42
      %48 = dma.hbm_to_vmem [thread:$0]  %s3, 2048, %s43, [#allocation7], 64, 64, 4
    $region17: #{tpu_custom_call.1} parent=1 // pred_fallthru
      _
    // Predicated region
    $region18: #{tpu_custom_call.1} parent=1 // pred_check
      _
    $region19: #{tpu_custom_call.1} parent=1 // pred_check_branch
      %50 = sbr.rel (0) target = $region21
    $region20: #{tpu_custom_call.1} parent=1 // pred_region
      _
    $region21: #{tpu_custom_call.1} parent=1 // pred_fallthru
      _
    // Predicated region
    $region22: #{tpu_custom_call.1} parent=1 // pred_check
      _
    $region23: #{tpu_custom_call.1} parent=1 // pred_check_branch
      %52 = sbr.rel (0) target = $region25
    $region24: #{tpu_custom_call.1} parent=1 // pred_region
      %53 = dma.done [#allocation4], 128
    $region25: #{tpu_custom_call.1} parent=1 // pred_fallthru
      _
    // Predicated region
    $region26: #{tpu_custom_call.1} parent=1 // pred_check
      _
    $region27: #{tpu_custom_call.1} parent=1 // pred_check_branch
      %55 = sbr.rel (0) target = $region29
    $region28: #{tpu_custom_call.1} parent=1 // pred_region
      %56 = dma.done [#allocation7], 512
    $region29: #{tpu_custom_call.1} parent=1 // pred_fallthru
      _
    // Predicated region
    $region30: #{tpu_custom_call.1} parent=1 // pred_check
      _
    $region31: #{tpu_custom_call.1} parent=1 // pred_check_branch
      %58 = sbr.rel (0) target = $region33
    $region32: #{tpu_custom_call.1} parent=1 // pred_region
      %59 = dma.done [#allocation7], 2048
    $region33: #{tpu_custom_call.1} parent=1 // pred_fallthru
      _
    %p61 = scmp.eq.s32.totalorder 0, 0
    // Predicated region
    $region34: #{tpu_custom_call.1} parent=1 // pred_check
      %p62 = pneg %p61
    $region35: #{tpu_custom_call.1} parent=1 // pred_check_branch
      %64 = sbr.rel (%p62) target = $region37
    $region36: #{tpu_custom_call.1} parent=1 // pred_region
      %65 = vst [vmem:[#allocation2] sm:$0xff] 0.0
    $region37: #{tpu_custom_call.1} parent=1 // pred_fallthru
      _
    %v66 = vld [vmem:[#allocation3] sm:$0xff]
    %v67 = vpack.c.bf16 %v66, %v66
    %v68 = vld [vmem:[#allocation6] sm:$0xff]
    %v69 = vld [vmem:[#allocation6 + $0x8] sm:$0xff]
    %v70 = vld [vmem:[#allocation6 + $0x10] sm:$0xff]
    %v71 = vld [vmem:[#allocation6 + $0x18] sm:$0xff]
    %v72 = vld [vmem:[%s2] sm:$0x3]
    %v74 = vlaneseq
    %v75 = vshrl.u32 %v74, 7
    %v76 = vsub.s32 0, %v75
    %v77 = vrot.slane %v72, %v76
    %v78 = vlaneseq
    %v79 = vshrl.u32 %v78, 7
    %v80 = vsub.s32 1, %v79
    %v81 = vrot.slane %v72, %v80
    %v88 = vunpack.c.l.b16 %v68
    %v89 = vunpack.c.h.b16 %v68
    %v90 = vunpack.c.l.b16 %v69
    %v91 = vunpack.c.h.b16 %v69
    %v92 = vunpack.c.l.b16 %v70
    %v93 = vunpack.c.h.b16 %v70
    %v94 = vunpack.c.l.b16 %v71
    %v95 = vunpack.c.h.b16 %v71
    %v96 = vpack.c.b16 %v90, %v88
    %v97 = vpack.c.b16 %v91, %v89
    %v98 = vpack.c.b16 %v94, %v92
    %v99 = vpack.c.b16 %v95, %v93
    %vm104 = vcmask 261120
    %v106 = vsel %vm104, %v67, 0
    %108 = vmatprep.subr.bf16.mxu0 %v97
    %109 = vmatpush1.bf16.msra.mxu0 %v96
    %110 = vmatprep.subr.bf16.mxu0 %v99
    %111 = vmatpush1.bf16.msra.mxu0 %v98
    %112 = vmatprep.subr.bf16.mxu0 0
    %113 = vmatpush1.bf16.msra.mxu0 0
    %114 = vmatprep.subr.bf16.mxu0 0
    %115 = vmatpush1.bf16.msra.mxu0 0
    %116 = vmatprep.subr.bf16.mxu0 0
    %117 = vmatpush1.bf16.msra.mxu0 0
    %118 = vmatprep.subr.bf16.mxu0 0
    %119 = vmatpush1.bf16.msra.mxu0 0
    %120 = vmatprep.subr.bf16.mxu0 0
    %121 = vmatpush1.bf16.msra.mxu0 0
    %122 = vmatprep.subr.bf16.mxu0 0
    %123 = vmatpush1.bf16.msra.mxu0 0
    %124 = vmatprep.subr.bf16.mxu0 0
    %125 = vmatpush1.bf16.msra.mxu0 0
    %126 = vmatprep.subr.bf16.mxu0 0
    %127 = vmatpush1.bf16.msra.mxu0 0
    %128 = vmatprep.subr.bf16.mxu0 0
    %129 = vmatpush1.bf16.msra.mxu0 0
    %130 = vmatprep.subr.bf16.mxu0 0
    %131 = vmatpush1.bf16.msra.mxu0 0
    %132 = vmatprep.subr.bf16.mxu0 0
    %133 = vmatpush1.bf16.msra.mxu0 0
    %134 = vmatprep.subr.bf16.mxu0 0
    %135 = vmatpush1.bf16.msra.mxu0 0
    %136 = vmatprep.subr.bf16.mxu0 0
    %137 = vmatpush1.bf16.msra.mxu0 0
    %138 = vmatprep.subr.bf16.mxu0 0
    %139 = vmatpush1.bf16.msra.mxu0 0
    %140 = vmatprep.mubr.bf16.mxu0 0
    %141 = vmatmul.mubr.bf16.gmra.mrb[0].mxu0 %v106
    %v142 = vpop.f32.mrb[0].mxu0
    %v143 = vadd.f32 %v77, %v142
    %v144 = vpop.f32.mrb[0].mxu0
    %v145 = vadd.f32 %v81, %v144
    %v146 = vpop.f32.mrb[0].mxu0
    %v147 = vpop.f32.mrb[0].mxu0
    %148 = vdwg.mxu0
    %v149 = vmax.f32 %v143, 0.0
    %v150 = vmax.f32 %v145, 0.0
    %v151 = vld [vmem:[#allocation2] sm:$0xff]
    %v152 = vpack.c.bf16 %v149, %v149
    %v153 = vpack.c.bf16 %v150, %v150
    %v154 = vld [vmem:[#allocation8] sm:$0xf]
    %v155 = vld [vmem:[#allocation8 + $0x4] sm:$0xf]
    %v156 = vld [vmem:[#allocation8 + $0x8] sm:$0xf]
    %v157 = vld [vmem:[#allocation8 + $0xc] sm:$0xf]
    %v158 = vld [vmem:[#allocation8 + $0x10] sm:$0xf]
    %v159 = vld [vmem:[#allocation8 + $0x14] sm:$0xf]
    %v160 = vld [vmem:[#allocation8 + $0x18] sm:$0xf]
    %v161 = vld [vmem:[#allocation8 + $0x1c] sm:$0xf]
    %v162 = vld [vmem:[#allocation8 + $0x20] sm:$0xf]
    %v163 = vld [vmem:[#allocation8 + $0x24] sm:$0xf]
    %v164 = vld [vmem:[#allocation8 + $0x28] sm:$0xf]
    %v165 = vld [vmem:[#allocation8 + $0x2c] sm:$0xf]
    %v166 = vld [vmem:[#allocation8 + $0x30] sm:$0xf]
    %v167 = vld [vmem:[#allocation8 + $0x34] sm:$0xf]
    %v168 = vld [vmem:[#allocation8 + $0x38] sm:$0xf]
    %v169 = vld [vmem:[#allocation8 + $0x3c] sm:$0xf]
    %v170 = vld [vmem:[#allocation8 + $0x40] sm:$0xf]
    %v171 = vld [vmem:[#allocation8 + $0x44] sm:$0xf]
    %v172 = vld [vmem:[#allocation8 + $0x48] sm:$0xf]
    %v173 = vld [vmem:[#allocation8 + $0x4c] sm:$0xf]
    %v174 = vld [vmem:[#allocation8 + $0x50] sm:$0xf]
    %v175 = vld [vmem:[#allocation8 + $0x54] sm:$0xf]
    %v176 = vld [vmem:[#allocation8 + $0x58] sm:$0xf]
    %v177 = vld [vmem:[#allocation8 + $0x5c] sm:$0xf]
    %v178 = vld [vmem:[#allocation8 + $0x60] sm:$0xf]
    %v179 = vld [vmem:[#allocation8 + $0x64] sm:$0xf]
    %v180 = vld [vmem:[#allocation8 + $0x68] sm:$0xf]
    %v181 = vld [vmem:[#allocation8 + $0x6c] sm:$0xf]
    %v182 = vld [vmem:[#allocation8 + $0x70] sm:$0xf]
    %v183 = vld [vmem:[#allocation8 + $0x74] sm:$0xf]
    %v184 = vld [vmem:[#allocation8 + $0x78] sm:$0xf]
    %v185 = vld [vmem:[#allocation8 + $0x7c] sm:$0xf]
    %v218 = vunpack.c.l.b16 %v154
    %v219 = vunpack.c.l.b16 %v155
    %v220 = vunpack.c.l.b16 %v156
    %v221 = vunpack.c.l.b16 %v157
    %v222 = vunpack.c.l.b16 %v158
    %v223 = vunpack.c.l.b16 %v159
    %v224 = vunpack.c.l.b16 %v160
    %v225 = vunpack.c.l.b16 %v161
    %v226 = vunpack.c.l.b16 %v162
    %v227 = vunpack.c.l.b16 %v163
    %v228 = vunpack.c.l.b16 %v164
    %v229 = vunpack.c.l.b16 %v165
    %v230 = vunpack.c.l.b16 %v166
    %v231 = vunpack.c.l.b16 %v167
    %v232 = vunpack.c.l.b16 %v168
    %v233 = vunpack.c.l.b16 %v169
    %v234 = vunpack.c.l.b16 %v170
    %v235 = vunpack.c.l.b16 %v171
    %v236 = vunpack.c.l.b16 %v172
    %v237 = vunpack.c.l.b16 %v173
    %v238 = vunpack.c.l.b16 %v174
    %v239 = vunpack.c.l.b16 %v175
    %v240 = vunpack.c.l.b16 %v176
    %v241 = vunpack.c.l.b16 %v177
    %v242 = vunpack.c.l.b16 %v178
    %v243 = vunpack.c.l.b16 %v179
    %v244 = vunpack.c.l.b16 %v180
    %v245 = vunpack.c.l.b16 %v181
    %v246 = vunpack.c.l.b16 %v182
    %v247 = vunpack.c.l.b16 %v183
    %v248 = vunpack.c.l.b16 %v184
    %v249 = vunpack.c.l.b16 %v185
    %v250 = vpack.c.b16 %v219, %v218
    %v251 = vpack.c.b16 %v221, %v220
    %v252 = vpack.c.b16 %v223, %v222
    %v253 = vpack.c.b16 %v225, %v224
    %v254 = vpack.c.b16 %v227, %v226
    %v255 = vpack.c.b16 %v229, %v228
    %v256 = vpack.c.b16 %v231, %v230
    %v257 = vpack.c.b16 %v233, %v232
    %v258 = vpack.c.b16 %v235, %v234
    %v259 = vpack.c.b16 %v237, %v236
    %v260 = vpack.c.b16 %v239, %v238
    %v261 = vpack.c.b16 %v241, %v240
    %v262 = vpack.c.b16 %v243, %v242
    %v263 = vpack.c.b16 %v245, %v244
    %v264 = vpack.c.b16 %v247, %v246
    %v265 = vpack.c.b16 %v249, %v248
    %282 = vmatprep.subr.bf16.mxu0 0
    %283 = vmatpush1.bf16.msra.mxu0 %v250
    %284 = vmatprep.subr.bf16.mxu0 0
    %285 = vmatpush1.bf16.msra.mxu0 %v251
    %286 = vmatprep.subr.bf16.mxu0 0
    %287 = vmatpush1.bf16.msra.mxu0 %v252
    %288 = vmatprep.subr.bf16.mxu0 0
    %289 = vmatpush1.bf16.msra.mxu0 %v253
    %290 = vmatprep.subr.bf16.mxu0 0
    %291 = vmatpush1.bf16.msra.mxu0 %v254
    %292 = vmatprep.subr.bf16.mxu0 0
    %293 = vmatpush1.bf16.msra.mxu0 %v255
    %294 = vmatprep.subr.bf16.mxu0 0
    %295 = vmatpush1.bf16.msra.mxu0 %v256
    %296 = vmatprep.subr.bf16.mxu0 0
    %297 = vmatpush1.bf16.msra.mxu0 %v257
    %298 = vmatprep.subr.bf16.mxu0 0
    %299 = vmatpush1.bf16.msra.mxu0 %v258
    %300 = vmatprep.subr.bf16.mxu0 0
    %301 = vmatpush1.bf16.msra.mxu0 %v259
    %302 = vmatprep.subr.bf16.mxu0 0
    %303 = vmatpush1.bf16.msra.mxu0 %v260
    %304 = vmatprep.subr.bf16.mxu0 0
    %305 = vmatpush1.bf16.msra.mxu0 %v261
    %306 = vmatprep.subr.bf16.mxu0 0
    %307 = vmatpush1.bf16.msra.mxu0 %v262
    %308 = vmatprep.subr.bf16.mxu0 0
    %309 = vmatpush1.bf16.msra.mxu0 %v263
    %310 = vmatprep.subr.bf16.mxu0 0
    %311 = vmatpush1.bf16.msra.mxu0 %v264
    %312 = vmatprep.subr.bf16.mxu0 0
    %313 = vmatpush1.bf16.msra.mxu0 %v265
    %314 = vmatprep.mubr.bf16.mxu0 %v153
    %315 = vmatmul.mubr.bf16.gmra.mrb[0].mxu0 %v152
    %v316 = vpop.f32.mrb[0].mxu0
    %v317 = vadd.f32 0.0, %v316
    %v318 = vpop.f32.mrb[0].mxu0
    %v319 = vpop.f32.mrb[0].mxu0
    %v320 = vpop.f32.mrb[0].mxu0
    %321 = vdwg.mxu0
    %v322 = vadd.f32 %v151, %v317
    %323 = vst [vmem:[#allocation2] sm:$0xff] %v322
    // Predicated region
    $region38: #{tpu_custom_call.1} parent=1 // pred_check
      %p324 = pneg %p61
    $region39: #{tpu_custom_call.1} parent=1 // pred_check_branch
      %326 = sbr.rel (%p324) target = $region41
    $region40: #{tpu_custom_call.1} parent=1 // pred_region
      %v327 = vld [vmem:[#allocation2] sm:$0xff]
      %v328 = vld [vmem:[%s4] sm:$0x1]
      %v330 = vlaneseq
      %v331 = vshrl.u32 %v330, 7
      %v332 = vsub.s32 0, %v331
      %v333 = vrot.slane %v328, %v332
      %v335 = vadd.f32 %v327, %v333
      %336 = vst [vmem:[#allocation9] sm:$0xff] %v335
    $region41: #{tpu_custom_call.1} parent=1 // pred_fallthru
      _
    // Predicated region
    $region42: #{tpu_custom_call.1} parent=1 // pred_check
      _
    $region43: #{tpu_custom_call.1} parent=1 // pred_check_branch
      %338 = sbr.rel (0) target = $region45
    $region44: #{tpu_custom_call.1} parent=1 // pred_region
      %s340 = ssub.s32 128, 128
      %341 = vsyncadd [#allocation5], %s340
      %s343 = sshll.u32 [#allocation9], 4
      %s344 = int_to_ptr.vmem [resolvable:$true] %s343
      %346 = dma.vmem_to_hbm [thread:$0]  %s344, 128, %s5, [#allocation5]
    $region45: #{tpu_custom_call.1} parent=1 // pred_fallthru
      _
    // Predicated region
    $region46: #{tpu_custom_call.1} parent=1 // pred_check
      _
    $region47: #{tpu_custom_call.1} parent=1 // pred_check_branch
      %348 = sbr.rel (0) target = $region49
    $region48: #{tpu_custom_call.1} parent=1 // pred_region
      %349 = dma.done [#allocation5], 128
    $region49: #{tpu_custom_call.1} parent=1 // pred_fallthru
      _
    %350 = vsyncpa [#allocation4], 1
    %351 = vsyncpa [#allocation7], 1
    %352 = vsyncpa [#allocation5], 1

</llo_original>
